<compile_context>
chip_gen: v7x
topology: tpu7x:2x2x1
jax: 0.10.0
libtpu: 0.0.40
codegen_flags: <defaults>
</compile_context>

<pallas_src>
import functools

import jax
import jax.numpy as jnp
from jax.experimental import pallas as pl
from jax.experimental.pallas import tpu as pltpu

_LANE = 128
_SUBLANE = 8


def _sumsq_kernel(z_ref, out_ref, *, block_rows, acc_rows, inner,
                  valid_rows, needs_mask):
    """Accumulate per-core partial sums of z^2 into a resident (1,acc_rows,128) block."""
    c = pl.program_id(0)   # parallel (per-core) axis
    i = pl.program_id(1)   # sequential reduction axis

    @pl.when(i == 0)
    def _init():
        out_ref[...] = jnp.zeros_like(out_ref)

    n_steps = block_rows // acc_rows    # exact by construction

    if needs_mask:
        # Global row offset of this *logical* block. Phantom blocks (clamped in
        # the index_map) have row0 >= valid_rows and contribute exactly zero.
        row0 = (c * inner + i) * block_rows
        base_rows = row0 + jax.lax.broadcasted_iota(
            jnp.int32, (acc_rows, 1), 0)          # (acc_rows, 1), hoisted

    def squared_slab(start_row, zc):
        zz = zc.astype(jnp.float32)
        zz = zz * zz
        if needs_mask:
            rows = base_rows + start_row          # lane-broadcast row ids
            zz = jnp.where(rows < valid_rows, zz, 0.0)
        return zz

    if n_steps == 1:
        acc = squared_slab(0, z_ref[...])
    else:
        def step(s, acc):
            r = pl.multiple_of(s * acc_rows, acc_rows)
            slab = z_ref[pl.ds(r, acc_rows), :]
            return acc + squared_slab(s * acc_rows, slab)

        unroll = 4 if n_steps % 4 == 0 else (2 if n_steps % 2 == 0 else 1)
        acc = jax.lax.fori_loop(
            0, n_steps, step,
            jnp.zeros((acc_rows, _LANE), jnp.float32),
            unroll=unroll)

    out_ref[0] += acc


def waveglow_loss(z, logdet, sigma=1.0, *, tile_rows=4096, ncores=2):
    """Pallas-TPU WaveGlowLoss.forward. Returns (loss, {})."""
    numel = int(z.size)
    sigma2 = float(sigma) ** 2

    # Flatten exactly like torch reshape(-1); free (metadata-only) reshape for
    # contiguous inputs, and astype is a no-op for float32 inputs.
    z_flat = jnp.ravel(z).astype(jnp.float32)

    # Rare fallback: make the flat length a multiple of 8*128 so the (R, 128)
    # view exists with R % 8 == 0 (zeros do not change sum(z^2)). Typical
    # WaveGlow sizes have numel % 1024 == 0, so no copy happens.
    pad = (-numel) % (_SUBLANE * _LANE)
    if pad:
        z_flat = jnp.concatenate([z_flat, jnp.zeros((pad,), jnp.float32)])

    R = z_flat.shape[0] // _LANE
    z2d = z_flat.reshape(R, _LANE)

    tile_rows = max(_SUBLANE, (int(tile_rows) // _SUBLANE) * _SUBLANE)
    block_rows = min(tile_rows, R)                 # multiple of 8, <= R
    grid_total = -(-R // block_rows)               # number of real row-blocks
    nc = max(1, min(int(ncores), grid_total))      # per-core split (v7x: 2 TCs)
    inner = -(-grid_total // nc)                   # sequential blocks per core
    has_phantom = nc * inner != grid_total
    needs_mask = has_phantom or (R % block_rows != 0)

    # Number of independent VPU accumulation chains: biggest k<=8 sublane
    # groups that exactly divides the block (8 for all "large" configs).
    groups = block_rows // _SUBLANE
    chains = next(k for k in range(8, 0, -1) if groups % k == 0)
    acc_rows = chains * _SUBLANE

    if has_phantom:
        # Phantom trailing blocks re-read the last real block (cheap, valid
        # DMA) and are fully masked out inside the kernel.
        def z_index_map(c, i):
            return (jnp.minimum(c * inner + i, grid_total - 1), 0)
    else:
        def z_index_map(c, i):
            return (c * inner + i, 0)

    kernel = functools.partial(
        _sumsq_kernel, block_rows=block_rows, acc_rows=acc_rows,
        inner=inner, valid_rows=R, needs_mask=needs_mask)

    partials = pl.pallas_call(
        kernel,
        out_shape=jax.ShapeDtypeStruct((nc, acc_rows, _LANE), jnp.float32),
        grid_spec=pltpu.PrefetchScalarGridSpec(
            num_scalar_prefetch=0,
            grid=(nc, inner),
            in_specs=[pl.BlockSpec((block_rows, _LANE), z_index_map)],
            out_specs=pl.BlockSpec((1, acc_rows, _LANE), lambda c, i: (c, 0, 0)),
        ),
        compiler_params=pltpu.CompilerParams(
            dimension_semantics=("parallel", "arbitrary")),
    )(z2d)

    # Tiny finalize (a few scalar flops + a small reduce) stays in plain JAX.
    sq_sum = jnp.sum(partials)
    loss = (0.5 * sq_sum / sigma2 - jnp.sum(logdet).astype(jnp.float32)) / numel
    return loss, {}


if __name__ == "__main__":
    def ref_loss(z, logdet, sigma):
        zf = jnp.ravel(z)
        return (0.5 * jnp.sum(zf * zf) / (sigma ** 2) - jnp.sum(logdet)) / zf.size

    key = jax.random.PRNGKey(0)
    cases = [
        # (z_shape, sigma, extra kwargs)
        ((2, 8, 1024), 1.0, {}),                    # aligned, single block, 2-slab inner loop
        ((2, 8, 832), 1.0, dict(tile_rows=48)),     # multi-block, 2-way split, ragged + phantom block
        ((3, 5, 7, 11), 0.7, {}),                   # numel not 1024-aligned -> tiny pad fallback
        ((2, 8, 8192), 0.9, dict(tile_rows=256)),   # both grid axes > 1, multi-step fori_loop
    ]
    for shape, sigma, kwargs in cases:
        key, kz, kl = jax.random.split(key, 3)
        z = jax.random.normal(kz, shape, dtype=jnp.float32)
        logdet = jax.random.normal(kl, (shape[0],), dtype=jnp.float32)

        loss, aux = waveglow_loss(z, logdet, sigma=sigma, **kwargs)
        loss = jax.block_until_ready(loss)

        ref = ref_loss(z, logdet, sigma)
        assert aux == {}
        assert jnp.allclose(loss, ref, rtol=1e-5, atol=1e-6), (shape, float(loss), float(ref))

    print("KERNEL_OK")
</pallas_src>

<mosaic_0001>
module attributes {stable_mosaic.version = 11 : i64} {
  func.func @_sumsq_kernel(%arg0: i32, %arg1: i32, %arg2: memref<128x128xf32, #tpu.memory_space<vmem>>, %arg3: memref<1x64x128xf32, #tpu.memory_space<vmem>>) attributes {dimension_semantics = [#tpu.dimension_semantics<parallel>, #tpu.dimension_semantics<arbitrary>], iteration_bounds = array<i64: 1, 1>, scalar_prefetch = 0 : i64, scratch_operands = 0 : i64, tpu.core_type = #tpu.core_type<tc>, window_params = [{transform_indices = @transform_0, window_bounds = array<i64: 128, 128>}, {transform_indices = @transform_1, window_bounds = array<i64: 1, 64, 128>}]} {
    %c0_i32 = arith.constant 0 : i32
    %0 = arith.cmpi eq, %arg1, %c0_i32 : i32
    %1 = arith.extui %0 : i1 to i32
    %c0_i32_0 = arith.constant 0 : i32
    %2 = arith.cmpi ne, %1, %c0_i32_0 : i32
    scf.if %2 {
      %cst_10 = arith.constant 0.000000e+00 : f32
      %22 = vector.broadcast %cst_10 : f32 to vector<1x64x128xf32>
      %c0_11 = arith.constant 0 : index
      %c0_12 = arith.constant 0 : index
      %c0_13 = arith.constant 0 : index
      %23 = vector.load %arg3[%c0_11, %c0_12, %c0_13] : memref<1x64x128xf32, #tpu.memory_space<vmem>>, vector<1x64x128xf32>
      tpu.vector_store %arg3[%c0_11, %c0_12, %c0_13], %22 {strides = array<i32>} : memref<1x64x128xf32, #tpu.memory_space<vmem>>, vector<1x64x128xf32>,
    } else {
    }
    %cst = arith.constant 0.000000e+00 : f32
    %3 = vector.broadcast %cst : f32 to vector<64x128xf32>
    %c0_i32_1 = arith.constant 0 : i32
    %c64_i32 = arith.constant 64 : i32
    %4 = arith.muli %c0_i32_1, %c64_i32 : i32
    %5 = tpu.assume_multiple %4, 64 : i32
    %6 = arith.index_cast %5 : i32 to index
    %c0 = arith.constant 0 : index
    %7 = vector.load %arg2[%6, %c0] : memref<128x128xf32, #tpu.memory_space<vmem>>, vector<64x128xf32>
    %8 = arith.mulf %7, %7 : vector<64x128xf32>
    %9 = arith.addf %3, %8 : vector<64x128xf32>
    %c1_i32 = arith.constant 1 : i32
    %c64_i32_2 = arith.constant 64 : i32
    %10 = arith.muli %c1_i32, %c64_i32_2 : i32
    %11 = tpu.assume_multiple %10, 64 : i32
    %12 = arith.index_cast %11 : i32 to index
    %c0_3 = arith.constant 0 : index
    %13 = vector.load %arg2[%12, %c0_3] : memref<128x128xf32, #tpu.memory_space<vmem>>, vector<64x128xf32>
    %14 = arith.mulf %13, %13 : vector<64x128xf32>
    %15 = arith.addf %9, %14 : vector<64x128xf32>
    %c2_i32 = arith.constant 2 : i32
    %c0_4 = arith.constant 0 : index
    %c0_5 = arith.constant 0 : index
    %c0_6 = arith.constant 0 : index
    %16 = vector.load %arg3[%c0_4, %c0_5, %c0_6] : memref<1x64x128xf32, #tpu.memory_space<vmem>>, vector<1x64x128xf32>
    %17 = vector.shape_cast %16 : vector<1x64x128xf32> to vector<64x128xf32>
    %18 = arith.addf %17, %15 : vector<64x128xf32>
    %c0_7 = arith.constant 0 : index
    %c0_8 = arith.constant 0 : index
    %c0_9 = arith.constant 0 : index
    %19 = vector.load %arg3[%c0_7, %c0_8, %c0_9] : memref<1x64x128xf32, #tpu.memory_space<vmem>>, vector<1x64x128xf32>
    %20 = vector.shape_cast %19 : vector<1x64x128xf32> to vector<64x128xf32>
    %21 = vector.shape_cast %18 : vector<64x128xf32> to vector<1x64x128xf32>
    tpu.vector_store %arg3[%c0_7, %c0_8, %c0_9], %21 {strides = array<i32>} : memref<1x64x128xf32, #tpu.memory_space<vmem>>, vector<1x64x128xf32>,
    return
  }
  func.func @transform_0(%arg0: i32, %arg1: i32) -> (i32, i32) {
    %c1_i32 = arith.constant 1 : i32
    %0 = arith.muli %arg0, %c1_i32 : i32
    %1 = arith.addi %0, %arg1 : i32
    %c0_i32 = arith.constant 0 : i32
    %c0_i32_0 = arith.constant 0 : i32
    return %1, %c0_i32 : i32, i32
  }
  func.func @transform_1(%arg0: i32, %arg1: i32) -> (i32, i32, i32) {
    %c0_i32 = arith.constant 0 : i32
    %c0_i32_0 = arith.constant 0 : i32
    %c0_i32_1 = arith.constant 0 : i32
    return %arg0, %c0_i32, %c0_i32_0 : i32, i32, i32
  }
}

</mosaic_0001>

<llo_original>
// kernel: tpu_custom_call.1
$region0: #{tpu_custom_call.1}
  #allocation0 [shape = 'u32[]', space=smem, size = 0x4, offset = 0x4, fixed_abs, tag = 'smem constant byte address 0x4 - core index']
  #allocation1 [shape = 'u32[144,128]{1,0:T(1,128)}', space=vmem, size = 0x12000, scoped, tag = 'internal scratch']
  %s0 = inlined_call_operand.hbm [shape: f32[128,128], index: 0, kind: input, shape index: {}]
  %s1 = inlined_call_operand.hbm [shape: f32[1,64,128], index: 1, kind: output, shape index: {}]
  %s2 = sld [smem:[#allocation0]]
  $region22: #{tpu_custom_call.1} parent=0
    _
  %s4 = ssub.s32 1, %s2
  %s5 = scalar_select 0, %s4, %s2
  $region1: #{tpu_custom_call.1} parent=0
    #allocation2 [shape = 'u8[65536]{0}', space=vmem, size = 0x10000, scoped, tag = 'input window, operand 0, single buffered']
    #allocation3 [shape = 's32[1]{0}', space=sflag, size = 0x4, scoped, tag = 'scoped memory for tpu_custom_call.1']
    #allocation4 [shape = 's32[1]{0}', space=sflag, size = 0x4, scoped, tag = 'scoped memory for tpu_custom_call.1']
    #allocation5 [shape = 'u8[32768]{0}', space=vmem, size = 0x8000, scoped, tag = 'output window, operand 0, single buffered']
    %6 = vsyncpa [#allocation3], 0
    %7 = vsyncpa [#allocation4], 0
    // Predicated region
    $region2: #{tpu_custom_call.1} parent=1 // pred_check
      _
    $region3: #{tpu_custom_call.1} parent=1 // pred_check_branch
      %9 = sbr.rel (0) target = $region5
    $region4: #{tpu_custom_call.1} parent=1 // pred_region
      %s10 = sadd.s32 0, 0
      %s11 = smul.u32 16, %s10
      %s13 = ssub.s32 2048, 2048
      %14 = vsyncadd [#allocation3], %s13
      %s15 = smul.addr %s11, 128
      %s16 = scalar_lea.hbm %s0, %s15
      %s17 = sshll.u32 [#allocation2], 4
      %s18 = int_to_ptr.vmem [resolvable:$true] %s17
      %23 = dma.hbm_to_vmem [thread:$0]  %s16, 2048, %s18, [#allocation3], 128, 128, 8
    $region5: #{tpu_custom_call.1} parent=1 // pred_fallthru
      _
    // Predicated region
    $region6: #{tpu_custom_call.1} parent=1 // pred_check
      _
    $region7: #{tpu_custom_call.1} parent=1 // pred_check_branch
      %25 = sbr.rel (0) target = $region9
    $region8: #{tpu_custom_call.1} parent=1 // pred_region
      %26 = dma.done [#allocation3], 2048
    $region9: #{tpu_custom_call.1} parent=1 // pred_fallthru
      _
    %s27 = sadd.s32 0, 0
    %s28 = smul.u32 16, %s27
    %p29 = scmp.eq.s32.totalorder 0, 0
    // Predicated region
    $region10: #{tpu_custom_call.1} parent=1 // pred_check
      %p30 = pneg %p29
    $region11: #{tpu_custom_call.1} parent=1 // pred_check_branch
      %32 = sbr.rel (%p30) target = $region13
    $region12: #{tpu_custom_call.1} parent=1 // pred_region
      %33 = vst [vmem:[#allocation5] sm:$0xff] 0.0
      %34 = vst [vmem:[#allocation5 + $0x8] sm:$0xff] 0.0
      %35 = vst [vmem:[#allocation5 + $0x10] sm:$0xff] 0.0
      %36 = vst [vmem:[#allocation5 + $0x18] sm:$0xff] 0.0
      %37 = vst [vmem:[#allocation5 + $0x20] sm:$0xff] 0.0
      %38 = vst [vmem:[#allocation5 + $0x28] sm:$0xff] 0.0
      %39 = vst [vmem:[#allocation5 + $0x30] sm:$0xff] 0.0
      %40 = vst [vmem:[#allocation5 + $0x38] sm:$0xff] 0.0
    $region13: #{tpu_custom_call.1} parent=1 // pred_fallthru
      _
    %v41 = vld [vmem:[#allocation2] sm:$0xff]
    %v42 = vld [vmem:[#allocation2 + $0x8] sm:$0xff]
    %v43 = vld [vmem:[#allocation2 + $0x10] sm:$0xff]
    %v44 = vld [vmem:[#allocation2 + $0x18] sm:$0xff]
    %v45 = vld [vmem:[#allocation2 + $0x20] sm:$0xff]
    %v46 = vld [vmem:[#allocation2 + $0x28] sm:$0xff]
    %v47 = vld [vmem:[#allocation2 + $0x30] sm:$0xff]
    %v48 = vld [vmem:[#allocation2 + $0x38] sm:$0xff]
    %v49 = vmul.f32 %v41, %v41
    %v50 = vmul.f32 %v42, %v42
    %v51 = vmul.f32 %v43, %v43
    %v52 = vmul.f32 %v44, %v44
    %v53 = vmul.f32 %v45, %v45
    %v54 = vmul.f32 %v46, %v46
    %v55 = vmul.f32 %v47, %v47
    %v56 = vmul.f32 %v48, %v48
    %v57 = vadd.f32 %v49, 0.0
    %v58 = vadd.f32 %v50, 0.0
    %v59 = vadd.f32 %v51, 0.0
    %v60 = vadd.f32 %v52, 0.0
    %v61 = vadd.f32 %v53, 0.0
    %v62 = vadd.f32 %v54, 0.0
    %v63 = vadd.f32 %v55, 0.0
    %v64 = vadd.f32 %v56, 0.0
    %s65 = scalar_lea.vmem [#allocation2], 64
    %v66 = vld [vmem:[%s65] sm:$0xff]
    %v67 = vld [vmem:[%s65 + $0x8] sm:$0xff]
    %v68 = vld [vmem:[%s65 + $0x10] sm:$0xff]
    %v69 = vld [vmem:[%s65 + $0x18] sm:$0xff]
    %v70 = vld [vmem:[%s65 + $0x20] sm:$0xff]
    %v71 = vld [vmem:[%s65 + $0x28] sm:$0xff]
    %v72 = vld [vmem:[%s65 + $0x30] sm:$0xff]
    %v73 = vld [vmem:[%s65 + $0x38] sm:$0xff]
    %v74 = vmul.f32 %v66, %v66
    %v75 = vmul.f32 %v67, %v67
    %v76 = vmul.f32 %v68, %v68
    %v77 = vmul.f32 %v69, %v69
    %v78 = vmul.f32 %v70, %v70
    %v79 = vmul.f32 %v71, %v71
    %v80 = vmul.f32 %v72, %v72
    %v81 = vmul.f32 %v73, %v73
    %v82 = vadd.f32 %v57, %v74
    %v83 = vadd.f32 %v58, %v75
    %v84 = vadd.f32 %v59, %v76
    %v85 = vadd.f32 %v60, %v77
    %v86 = vadd.f32 %v61, %v78
    %v87 = vadd.f32 %v62, %v79
    %v88 = vadd.f32 %v63, %v80
    %v89 = vadd.f32 %v64, %v81
    %v90 = vld [vmem:[#allocation5] sm:$0xff]
    %v91 = vld [vmem:[#allocation5 + $0x8] sm:$0xff]
    %v92 = vld [vmem:[#allocation5 + $0x10] sm:$0xff]
    %v93 = vld [vmem:[#allocation5 + $0x18] sm:$0xff]
    %v94 = vld [vmem:[#allocation5 + $0x20] sm:$0xff]
    %v95 = vld [vmem:[#allocation5 + $0x28] sm:$0xff]
    %v96 = vld [vmem:[#allocation5 + $0x30] sm:$0xff]
    %v97 = vld [vmem:[#allocation5 + $0x38] sm:$0xff]
    %v98 = vadd.f32 %v90, %v82
    %v99 = vadd.f32 %v91, %v83
    %v100 = vadd.f32 %v92, %v84
    %v101 = vadd.f32 %v93, %v85
    %v102 = vadd.f32 %v94, %v86
    %v103 = vadd.f32 %v95, %v87
    %v104 = vadd.f32 %v96, %v88
    %v105 = vadd.f32 %v97, %v89
    %106 = vst [vmem:[#allocation5] sm:$0xff] %v98
    %107 = vst [vmem:[#allocation5 + $0x8] sm:$0xff] %v99
    %108 = vst [vmem:[#allocation5 + $0x10] sm:$0xff] %v100
    %109 = vst [vmem:[#allocation5 + $0x18] sm:$0xff] %v101
    %110 = vst [vmem:[#allocation5 + $0x20] sm:$0xff] %v102
    %111 = vst [vmem:[#allocation5 + $0x28] sm:$0xff] %v103
    %112 = vst [vmem:[#allocation5 + $0x30] sm:$0xff] %v104
    %113 = vst [vmem:[#allocation5 + $0x38] sm:$0xff] %v105
    // Predicated region
    $region14: #{tpu_custom_call.1} parent=1 // pred_check
      _
    $region15: #{tpu_custom_call.1} parent=1 // pred_check_branch
      %115 = sbr.rel (0) target = $region17
    $region16: #{tpu_custom_call.1} parent=1 // pred_region
      %s117 = ssub.s32 1024, 1024
      %118 = vsyncadd [#allocation4], %s117
      %s119 = sshll.u32 [#allocation5], 4
      %s120 = int_to_ptr.vmem [resolvable:$true] %s119
      %125 = dma.vmem_to_hbm [thread:$0]  %s120, 1024, %s1, [#allocation4], 128, 128, 8
    $region17: #{tpu_custom_call.1} parent=1 // pred_fallthru
      _
    // Predicated region
    $region18: #{tpu_custom_call.1} parent=1 // pred_check
      _
    $region19: #{tpu_custom_call.1} parent=1 // pred_check_branch
      %127 = sbr.rel (0) target = $region21
    $region20: #{tpu_custom_call.1} parent=1 // pred_region
      %128 = dma.done [#allocation4], 1024
    $region21: #{tpu_custom_call.1} parent=1 // pred_fallthru
      _
    %129 = vsyncpa [#allocation3], 1
    %130 = vsyncpa [#allocation4], 1

</llo_original>
